<compile_context>
chip_gen: v6e
topology: v6e:2x2x1
jax: 0.10.0
libtpu: 0.0.40
codegen_flags: <defaults>
</compile_context>

<pallas_src>
import jax
import jax.numpy as jnp
from jax.experimental import pallas as pl
from jax.experimental.pallas import tpu as pltpu


def _round_up(x, m):
    return ((x + m - 1) // m) * m


# ----------------------------------------------------------------------------
# Kernel 1: tiled linear embedding  (M, K) @ (K, N) + (1, N) -> (M, N)
#   x, w in bf16 (MXU); accumulate directly into the resident f32 output block.
# ----------------------------------------------------------------------------
def _embed_kernel(x_ref, w_ref, b_ref, o_ref):
    @pl.when(pl.program_id(2) == 0)
    def _init():
        o_ref[...] = jnp.zeros_like(o_ref)

    o_ref[...] += jnp.dot(x_ref[...], w_ref[...],
                          preferred_element_type=jnp.float32)

    @pl.when(pl.program_id(2) == pl.num_programs(2) - 1)
    def _bias():
        o_ref[...] += b_ref[...]


def _pick_tiles(M, N, K):
    tm = min(512, _round_up(M, 16))
    tk = next((t for t in (512, 256, 128) if K % t == 0), K)
    tn = next((t for t in (512, 256, 128) if N % t == 0), N)
    # v7x: ensure at least one "parallel" grid axis has >= 2 blocks so the
    # second TensorCore is not idle at small demo-scale M.
    if pl.cdiv(M, tm) == 1 and N // tn == 1:
        if M > 16:
            tm = _round_up(pl.cdiv(M, 2), 16)
        else:
            for t in (256, 128):
                if N % t == 0 and N // t >= 2:
                    tn = t
                    break
    return tm, tn, tk


def embed(x, w, b):
    """x: (M, K) bf16, w: (K, N) bf16, b: (1, N) f32 -> (M, N) f32."""
    M, K = x.shape
    N = w.shape[1]
    tm, tn, tk = _pick_tiles(M, N, K)

    # No input padding: the boundary M tile overhangs; Pallas DMAs only the
    # valid rows in and only writes the valid rows back.
    grid = (pl.cdiv(M, tm), N // tn, K // tk)
    return pl.pallas_call(
        _embed_kernel,
        out_shape=jax.ShapeDtypeStruct((M, N), jnp.float32),
        grid=grid,
        in_specs=[
            pl.BlockSpec((tm, tk), lambda i, j, k: (i, k)),
            pl.BlockSpec((tk, tn), lambda i, j, k: (k, j)),
            pl.BlockSpec((1, tn), lambda i, j, k: (0, j)),
        ],
        out_specs=pl.BlockSpec((tm, tn), lambda i, j, k: (i, j)),
        compiler_params=pltpu.CompilerParams(
            dimension_semantics=("parallel", "parallel", "arbitrary")),
    )(x, w, b)


# ----------------------------------------------------------------------------
# Kernel 2: DistanceNetwork (batched Gram-matrix form, single grid step)
#   avg     : (way, way*shot)   averaging matrix (prototype mean on the MXU)
#   support : (bs, way*shot, F)
#   query   : (bs, Q, F)        Q = query_num * way
#   out     : (bs, Q, way)
# ----------------------------------------------------------------------------
def _distance_kernel(avg_ref, s_ref, q_ref, o_ref):
    avg = avg_ref[...]                                  # (way, ws)   f32
    s = s_ref[...]                                      # (bs, ws, F) f32
    q = q_ref[...]                                      # (bs, Q, F)  f32
    bs, way, ws = s.shape[0], avg.shape[0], avg.shape[1]
    feat = q.shape[-1]

    # Prototype mean as a batched averaging matmul (MXU).
    avg_b = jnp.broadcast_to(avg[None], (bs, way, ws))
    proto = jnp.einsum('bws,bsf->bwf', avg_b, s,
                       preferred_element_type=jnp.float32)        # (bs, way, F)

    # Gram-form distance; the per-query-row ||q||^2 term is omitted because it
    # cancels exactly under the row-max subtraction below.
    cross = jnp.einsum('bqf,bwf->bqw', q, proto,
                       preferred_element_type=jnp.float32)        # (bs, Q, way)
    p_norm = jnp.sum(proto * proto, axis=-1)[:, None, :]          # (bs, 1, way)

    sim = (2.0 * cross - p_norm) * (1.0 / feat)                   # (bs, Q, way)
    sim = sim - jnp.max(sim, axis=-1, keepdims=True)
    o_ref[...] = sim.astype(o_ref.dtype)


def distance_network(avg, support_features, query_features):
    bs, _, _ = support_features.shape
    q_count = query_features.shape[1]
    way = avg.shape[0]
    # Whole few-shot problem fits comfortably in VMEM: one call, no grid, all
    # batch elements handled by batched einsums (no per-b grid-step overhead).
    return pl.pallas_call(
        _distance_kernel,
        out_shape=jax.ShapeDtypeStruct((bs, q_count, way), jnp.float32),
    )(avg, support_features, query_features)


# ----------------------------------------------------------------------------
# PrototypeNetwork forward
# ----------------------------------------------------------------------------
def prototype_network_forward(support_set_x, query_set_x, w_embed, b_embed,
                              way, shot, query_num=1):
    bs = support_set_x.shape[0]
    c, h, w = support_set_x.shape[-3:]
    d_in = c * h * w
    feat = w_embed.shape[1]
    q_count = query_num * way
    n_s = bs * way * shot
    n_q = bs * q_count

    # Cast to bf16 BEFORE concatenating so the wrapper copies half the bytes;
    # one fused embedding matmul over the concatenated support+query rows keeps
    # the weight stream from HBM to a single pass.
    s_flat = support_set_x.reshape(n_s, d_in).astype(jnp.bfloat16)
    q_flat = query_set_x.reshape(n_q, d_in).astype(jnp.bfloat16)
    x_all = jnp.concatenate([s_flat, q_flat], axis=0)

    emb = embed(x_all, w_embed.astype(jnp.bfloat16), b_embed.astype(jnp.float32))

    support_emb = emb[:n_s].reshape(bs, way * shot, feat)
    query_emb = emb[n_s:].reshape(bs, q_count, feat)

    # Averaging matrix: row i has 1/shot over the shots of class i.
    avg = jnp.repeat(jnp.eye(way, dtype=jnp.float32), shot, axis=1) / shot

    return distance_network(avg, support_emb, query_emb)     # (bs, Q, way)


# Pure-JAX reference of the forward pass (same bf16-cast embedding numerics,
# but the distance is the straightforward diff-based PyTorch formulation).
def _reference_forward(support_set_x, query_set_x, w_embed, b_embed,
                       way, shot, query_num=1):
    bs = support_set_x.shape[0]
    c, h, w = support_set_x.shape[-3:]
    feat = w_embed.shape[1]
    wb = w_embed.astype(jnp.bfloat16)
    s = jnp.dot(support_set_x.reshape(-1, c * h * w).astype(jnp.bfloat16), wb,
                preferred_element_type=jnp.float32) + b_embed
    q = jnp.dot(query_set_x.reshape(-1, c * h * w).astype(jnp.bfloat16), wb,
                preferred_element_type=jnp.float32) + b_embed
    s = s.reshape(bs, way, shot, feat)
    q = q.reshape(bs, query_num * way, feat)
    proto = jnp.mean(s, axis=2)                               # (bs, way, F)
    diff = proto[:, None, :, :] - q[:, :, None, :]            # (bs, Q, way, F)
    sim = jnp.mean(-(diff ** 2), axis=-1)                     # (bs, Q, way)
    sim = sim - jnp.max(sim, axis=-1, keepdims=True)
    return sim


if __name__ == "__main__":
    key = jax.random.PRNGKey(0)
    k1, k2, k3, k4 = jax.random.split(key, 4)

    # Small shapes consistent with the module's forward.
    bs, way, shot, query_num = 2, 4, 2, 1
    c, h, w = 4, 16, 16
    feature_len = 256          # multiple of 256: fills the v6e/v7x MXU width
    d_in = c * h * w

    support_set_x = jax.random.normal(k1, (bs, way, shot, c, h, w), jnp.float32)
    query_set_x = jax.random.normal(k2, (bs, query_num * way, c, h, w), jnp.float32)
    support_set_y = jnp.tile(jnp.arange(way)[None, :, None], (bs, 1, shot))  # unused in forward

    # Deterministic synthetic embedding parameters (stand-in backbone).
    w_embed = jax.random.normal(k3, (d_in, feature_len), jnp.float32) * (1.0 / jnp.sqrt(d_in))
    b_embed = jax.random.normal(k4, (1, feature_len), jnp.float32) * 0.01

    out = prototype_network_forward(support_set_x, query_set_x,
                                    w_embed, b_embed, way, shot, query_num)
    out = jax.block_until_ready(out)

    ref = _reference_forward(support_set_x, query_set_x,
                             w_embed, b_embed, way, shot, query_num)
    assert out.shape == (bs, query_num * way, way), out.shape
    assert jnp.allclose(out, ref, atol=1e-3, rtol=1e-3), "mismatch vs reference"

    print("KERNEL_OK")
</pallas_src>

<mosaic_0001>
module attributes {stable_mosaic.version = 11 : i64} {
  func.func @_embed_kernel(%arg0: i32, %arg1: i32, %arg2: i32, %arg3: memref<16x512xbf16, #tpu.memory_space<vmem>>, %arg4: memref<512x256xbf16, #tpu.memory_space<vmem>>, %arg5: memref<1x256xf32, #tpu.memory_space<vmem>>, %arg6: memref<16x256xf32, #tpu.memory_space<vmem>>) attributes {dimension_semantics = [#tpu.dimension_semantics<parallel>, #tpu.dimension_semantics<parallel>, #tpu.dimension_semantics<arbitrary>], iteration_bounds = array<i64: 2, 1, 2>, scalar_prefetch = 0 : i64, scratch_operands = 0 : i64, tpu.core_type = #tpu.core_type<tc>, window_params = [{transform_indices = @transform_0, window_bounds = array<i64: 16, 512>}, {transform_indices = @transform_1, window_bounds = array<i64: 512, 256>}, {transform_indices = @transform_2, window_bounds = array<i64: 1, 256>}, {transform_indices = @transform_3, window_bounds = array<i64: 16, 256>}]} {
    %c0_i32 = arith.constant 0 : i32
    %0 = arith.cmpi eq, %arg2, %c0_i32 : i32
    %1 = arith.extui %0 : i1 to i32
    %c0_i32_0 = arith.constant 0 : i32
    %2 = arith.cmpi ne, %1, %c0_i32_0 : i32
    scf.if %2 {
      %cst_9 = arith.constant 0.000000e+00 : f32
      %12 = vector.broadcast %cst_9 : f32 to vector<16x256xf32>
      %c0_10 = arith.constant 0 : index
      %c0_11 = arith.constant 0 : index
      %13 = vector.load %arg6[%c0_10, %c0_11] : memref<16x256xf32, #tpu.memory_space<vmem>>, vector<16x256xf32>
      tpu.vector_store %arg6[%c0_10, %c0_11], %12 {strides = array<i32>} : memref<16x256xf32, #tpu.memory_space<vmem>>, vector<16x256xf32>,
    } else {
    }
    %c0 = arith.constant 0 : index
    %c0_1 = arith.constant 0 : index
    %3 = vector.load %arg6[%c0, %c0_1] : memref<16x256xf32, #tpu.memory_space<vmem>>, vector<16x256xf32>
    %c0_2 = arith.constant 0 : index
    %c0_3 = arith.constant 0 : index
    %4 = vector.load %arg3[%c0_2, %c0_3] : memref<16x512xbf16, #tpu.memory_space<vmem>>, vector<16x512xbf16>
    %c0_4 = arith.constant 0 : index
    %c0_5 = arith.constant 0 : index
    %5 = vector.load %arg4[%c0_4, %c0_5] : memref<512x256xbf16, #tpu.memory_space<vmem>>, vector<512x256xbf16>
    %cst = arith.constant dense<0.000000e+00> : vector<16x256xf32>
    %6 = tpu.matmul %4, %5, %cst {dimension_numbers = #tpu.dot_dimension_numbers<[1], [0], [0], [1], [0, 0, 1, 1], [], []>} : vector<16x512xbf16>, vector<512x256xbf16>, vector<16x256xf32> -> vector<16x256xf32>
    %7 = arith.addf %3, %6 : vector<16x256xf32>
    %c0_6 = arith.constant 0 : index
    %c0_7 = arith.constant 0 : index
    %8 = vector.load %arg6[%c0_6, %c0_7] : memref<16x256xf32, #tpu.memory_space<vmem>>, vector<16x256xf32>
    tpu.vector_store %arg6[%c0_6, %c0_7], %7 {strides = array<i32>} : memref<16x256xf32, #tpu.memory_space<vmem>>, vector<16x256xf32>,
    %c1_i32 = arith.constant 1 : i32
    %9 = arith.cmpi eq, %arg2, %c1_i32 : i32
    %10 = arith.extui %9 : i1 to i32
    %c0_i32_8 = arith.constant 0 : i32
    %11 = arith.cmpi ne, %10, %c0_i32_8 : i32
    scf.if %11 {
      %c0_9 = arith.constant 0 : index
      %c0_10 = arith.constant 0 : index
      %12 = vector.load %arg6[%c0_9, %c0_10] : memref<16x256xf32, #tpu.memory_space<vmem>>, vector<16x256xf32>
      %c0_11 = arith.constant 0 : index
      %c0_12 = arith.constant 0 : index
      %13 = vector.load %arg5[%c0_11, %c0_12] : memref<1x256xf32, #tpu.memory_space<vmem>>, vector<1x256xf32>
      %14 = vector.broadcast %13 : vector<1x256xf32> to vector<16x256xf32>
      %15 = arith.addf %12, %14 : vector<16x256xf32>
      %c0_13 = arith.constant 0 : index
      %c0_14 = arith.constant 0 : index
      %16 = vector.load %arg6[%c0_13, %c0_14] : memref<16x256xf32, #tpu.memory_space<vmem>>, vector<16x256xf32>
      tpu.vector_store %arg6[%c0_13, %c0_14], %15 {strides = array<i32>} : memref<16x256xf32, #tpu.memory_space<vmem>>, vector<16x256xf32>,
    } else {
    }
    return
  }
  func.func @transform_0(%arg0: i32, %arg1: i32, %arg2: i32) -> (i32, i32) {
    %c0_i32 = arith.constant 0 : i32
    return %arg0, %arg2 : i32, i32
  }
  func.func @transform_1(%arg0: i32, %arg1: i32, %arg2: i32) -> (i32, i32) {
    %c0_i32 = arith.constant 0 : i32
    return %arg2, %arg1 : i32, i32
  }
  func.func @transform_2(%arg0: i32, %arg1: i32, %arg2: i32) -> (i32, i32) {
    %c0_i32 = arith.constant 0 : i32
    %c0_i32_0 = arith.constant 0 : i32
    return %c0_i32, %arg1 : i32, i32
  }
  func.func @transform_3(%arg0: i32, %arg1: i32, %arg2: i32) -> (i32, i32) {
    %c0_i32 = arith.constant 0 : i32
    return %arg0, %arg1 : i32, i32
  }
}

</mosaic_0001>

<llo_original>
// kernel: tpu_custom_call.1
$region0: #{tpu_custom_call.1}
  #allocation0 [shape = 'u32[]', space=smem, size = 0x4, offset = 0x4, fixed_abs, tag = 'smem constant byte address 0x4 - core index']
  #allocation1 [shape = 'u32[144,128]{1,0:T(1,128)}', space=vmem, size = 0x12000, scoped, tag = 'internal scratch']
  %s0 = inlined_call_operand.hbm [shape: bf16[24,1024], index: 0, kind: input, shape index: {}]
  %s1 = inlined_call_operand.hbm [shape: bf16[1024,256], index: 1, kind: input, shape index: {}]
  %s2 = inlined_call_operand.vmem [shape: f32[1,256], index: 2, kind: input, shape index: {}]
  %s3 = inlined_call_operand.hbm [shape: f32[24,256], index: 3, kind: output, shape index: {}]
  %s4 = sld [smem:[#allocation0]]
  $region61: #{tpu_custom_call.1} parent=0
    _
  %s6 = ssub.s32 1, %s4
  %s7 = scalar_select 0, %s6, %s4
  $region1: #{tpu_custom_call.1} parent=0
    #allocation2 [shape = 'u8[32768]{0}', space=vmem, size = 0x8000, scoped, tag = 'input window, operand 0']
    #allocation3 [shape = 's32[2]{0}', space=sflag, size = 0x8, scoped, tag = 'scoped memory for tpu_custom_call.1']
    #allocation4 [shape = 's32[2]{0}', space=sflag, size = 0x8, scoped, tag = 'scoped memory for tpu_custom_call.1']
    #allocation5 [shape = 'u8[524288]{0}', space=vmem, size = 0x80000, scoped, tag = 'input window, operand 1']
    #allocation6 [shape = 's32[2]{0}', space=sflag, size = 0x8, scoped, tag = 'scoped memory for tpu_custom_call.1']
    #allocation7 [shape = 'u8[32768]{0}', space=vmem, size = 0x8000, scoped, tag = 'output window, operand 0']
    %8 = vsyncpa [#allocation3], 0
    %s9 = scalar_lea.sflag [#allocation3], 1
    %10 = vsyncpa %s9, 0
    %11 = vsyncpa [#allocation6], 0
    %s12 = scalar_lea.sflag [#allocation6], 1
    %13 = vsyncpa %s12, 0
    %14 = vsyncpa [#allocation4], 0
    %s15 = scalar_lea.sflag [#allocation4], 1
    %16 = vsyncpa %s15, 0
    loop: start=0, step=1, limit=6
    $region2: #{tpu_custom_call.1} parent=1 // loop_pre_header
      _
    $region3: #{tpu_custom_call.1} parent=1 // loop_header
      %s18 = sphi 0, %s22
      %p19 = scmp.ge.s32.totalorder %s18, 6
      %s25 = sphi 0, %s44
      %s26 = sphi 0, %s40
      %s27 = sphi 0, %s36
      %s28 = sphi 0, %s25
      %s29 = sphi 0, %s26
      %s30 = sphi 0, %s27
      %s31 = sphi 0, %s28
      %s32 = sphi 0, %s29
      %s33 = sphi 0, %s30
      %s49 = sphi 0, %s51
      %s52 = sphi 0, %s49
      %s53 = sphi 0, %s52
      %s69 = sphi 0, %s53
      %s77 = sphi 0, %s79
      %s80 = sphi 0, %s77
      %s81 = sphi 0, %s80
      %s97 = sphi 0, %s81
      %s103 = sphi 0, %s105
      %s106 = sphi 0, %s103
      %s107 = sphi 0, %s106
      %s123 = sphi 0, %s107
      %s131 = sphi 0, %s133
      %s134 = sphi 0, %s131
      %s135 = sphi 0, %s134
      %s151 = sphi 0, %s135
    $region4: #{tpu_custom_call.1} parent=1 // loop_header_branch
      %21 = sbr.rel (%p19) target = $region8
    $region5: #{tpu_custom_call.1} parent=1 // loop_body
      %s23 = ssub.s32 %s18, 1
      %s24 = ssub.s32 %s18, 2
      %s34 = sadd.s32 1, %s27
      %p35 = scmp.ge.s32.totalorder %s34, 2
      %s36 = scalar_select %p35, 0, %s34
      %s37 = sadd.s32 1, %s26
      %s38 = scalar_select %p35, %s37, %s26
      %p39 = scmp.ge.s32.totalorder %s38, 1
      %s40 = scalar_select %p39, 0, %s38
      %s41 = sadd.s32 1, %s25
      %s42 = scalar_select %p39, %s41, %s25
      %p43 = scmp.ge.s32.totalorder %s42, 2
      %s44 = scalar_select %p43, 0, %s42
      %s45 = ssub.s32 %s25, %s44
      %s46 = ssub.s32 %s27, %s36
      %s47 = sor.u32 %s45, %s46
      %p48 = scmp.eq.s32.totalorder %s47, 0
      %s50 = sadd.s32 %s49, 1
      %s51 = scalar_select %p48, %s49, %s50
      %p54 = pneg %p48
      %p55 = scmp.eq.s32.totalorder %s18, 3
      %p56 = por %p54, %p55
      %p57 = scmp.ne.s32.totalorder %s49, %s52
      %p58 = scmp.eq.s32.totalorder %s18, 0
      %p59 = por %p57, %p58
      %p60 = scmp.ne.s32.totalorder %s49, %s52
      %p61 = scmp.eq.s32.totalorder %s23, 3
      %p62 = por %p60, %p61
      %p63 = scmp.ne.s32.totalorder %s52, %s53
      %p64 = scmp.eq.s32.totalorder %s23, 0
      %p65 = por %p63, %p64
      %p66 = scmp.ne.s32.totalorder %s52, %s53
      %p67 = scmp.eq.s32.totalorder %s24, 3
      %p68 = por %p66, %p67
      %p70 = scmp.ne.s32.totalorder %s53, %s69
      %p71 = scmp.eq.s32.totalorder %s24, 0
      %p72 = por %p70, %p71
      %s73 = ssub.s32 %s27, %s36
      %s74 = ssub.s32 %s26, %s40
      %s75 = sor.u32 %s73, %s74
      %p76 = scmp.eq.s32.totalorder %s75, 0
      %s78 = sadd.s32 %s77, 1
      %s79 = scalar_select %p76, %s77, %s78
      %p82 = pneg %p76
      %p83 = scmp.eq.s32.totalorder %s18, 3
      %p84 = por %p82, %p83
      %p85 = scmp.ne.s32.totalorder %s77, %s80
      %p86 = scmp.eq.s32.totalorder %s18, 0
      %p87 = por %p85, %p86
      %p88 = scmp.ne.s32.totalorder %s77, %s80
      %p89 = scmp.eq.s32.totalorder %s23, 3
      %p90 = por %p88, %p89
      %p91 = scmp.ne.s32.totalorder %s80, %s81
      %p92 = scmp.eq.s32.totalorder %s23, 0
      %p93 = por %p91, %p92
      %p94 = scmp.ne.s32.totalorder %s80, %s81
      %p95 = scmp.eq.s32.totalorder %s24, 3
      %p96 = por %p94, %p95
      %p98 = scmp.ne.s32.totalorder %s81, %s97
      %p99 = scmp.eq.s32.totalorder %s24, 0
      %p100 = por %p98, %p99
      %s101 = ssub.s32 %s26, %s40
      %p102 = scmp.eq.s32.totalorder %s101, 0
      %s104 = sadd.s32 %s103, 1
      %s105 = scalar_select %p102, %s103, %s104
      %p108 = pneg %p102
      %p109 = scmp.eq.s32.totalorder %s18, 3
      %p110 = por %p108, %p109
      %p111 = scmp.ne.s32.totalorder %s103, %s106
      %p112 = scmp.eq.s32.totalorder %s18, 0
      %p113 = por %p111, %p112
      %p114 = scmp.ne.s32.totalorder %s103, %s106
      %p115 = scmp.eq.s32.totalorder %s23, 3
      %p116 = por %p114, %p115
      %p117 = scmp.ne.s32.totalorder %s106, %s107
      %p118 = scmp.eq.s32.totalorder %s23, 0
      %p119 = por %p117, %p118
      %p120 = scmp.ne.s32.totalorder %s106, %s107
      %p121 = scmp.eq.s32.totalorder %s24, 3
      %p122 = por %p120, %p121
      %p124 = scmp.ne.s32.totalorder %s107, %s123
      %p125 = scmp.eq.s32.totalorder %s24, 0
      %p126 = por %p124, %p125
      %s127 = ssub.s32 %s25, %s44
      %s128 = ssub.s32 %s26, %s40
      %s129 = sor.u32 %s127, %s128
      %p130 = scmp.eq.s32.totalorder %s129, 0
      %s132 = sadd.s32 %s131, 1
      %s133 = scalar_select %p130, %s131, %s132
      %p136 = pneg %p130
      %p137 = scmp.eq.s32.totalorder %s18, 3
      %p138 = por %p136, %p137
      %p139 = scmp.ne.s32.totalorder %s131, %s134
      %p140 = scmp.eq.s32.totalorder %s18, 0
      %p141 = por %p139, %p140
      %p142 = scmp.ne.s32.totalorder %s131, %s134
      %p143 = scmp.eq.s32.totalorder %s23, 3
      %p144 = por %p142, %p143
      %p145 = scmp.ne.s32.totalorder %s134, %s135
      %p146 = scmp.eq.s32.totalorder %s23, 0
      %p147 = por %p145, %p146
      %p148 = scmp.ne.s32.totalorder %s134, %s135
      %p149 = scmp.eq.s32.totalorder %s24, 3
      %p150 = por %p148, %p149
      %p152 = scmp.ne.s32.totalorder %s135, %s151
      %p153 = scmp.eq.s32.totalorder %s24, 0
      %p154 = por %p152, %p153
      %p155 = scmp.le.s32.totalorder 1, %s18
      %p156 = scmp.lt.s32.totalorder %s18, 5
      %p157 = pnand %p155, %p156
      %p158 = pneg %p157
      // Predicated region
      $region9: #{tpu_custom_call.1} parent=5 // pred_check
        _
      $region10: #{tpu_custom_call.1} parent=5 // pred_check_branch
        %160 = sbr.rel (%p157) target = $region12
      $region11: #{tpu_custom_call.1} parent=5 // pred_region
        %s161 = ssub.s32 %s18, 1
        // Predicated region
        $region13: #{tpu_custom_call.1} parent=11 // pred_check
          %p162 = pneg %p119
        $region14: #{tpu_custom_call.1} parent=11 // pred_check_branch
          %164 = sbr.rel (%p162) target = $region16
        $region15: #{tpu_custom_call.1} parent=11 // pred_region
          %s165 = smul.u32 2, %s29
          %p166 = scmp.lt.s32.totalorder %s165, 1
          %s167 = scalar_select %p166, %s165, 1
          %s168 = scalar_lea.vmem %s2, %s167
          %s169 = smul.u32 2, %s29
        $region16: #{tpu_custom_call.1} parent=11 // pred_fallthru
          _
      $region12: #{tpu_custom_call.1} parent=5 // pred_fallthru
        _
      %p170 = scmp.lt.s32.totalorder %s18, 4
      // Predicated region
      $region17: #{tpu_custom_call.1} parent=5 // pred_check
        %p171 = pneg %p170
      $region18: #{tpu_custom_call.1} parent=5 // pred_check_branch
        %173 = sbr.rel (%p171) target = $region20
      $region19: #{tpu_custom_call.1} parent=5 // pred_region
        // Predicated region
        $region21: #{tpu_custom_call.1} parent=19 // pred_check
          %p174 = pneg %p59
        $region22: #{tpu_custom_call.1} parent=19 // pred_check_branch
          %176 = sbr.rel (%p174) target = $region24
        $region23: #{tpu_custom_call.1} parent=19 // pred_region
          %s177 = sand.u32 %s49, 1
          %s178 = scalar_lea.sflag [#allocation3], %s177
          %s179 = sand.u32 %s49, 1
          %s180 = smul.addr %s179, 32
          %s181 = scalar_lea.vmem [#allocation2], %s180
          %s182 = smul.u32 2, %s25
          %s183 = smul.u32 4, %s27
          %s184 = ssub.s32 3, %s182
          %p185 = scmp.lt.s32.totalorder %s184, 2
          %s186 = scalar_select %p185, %s184, 2
          %s187 = smul.u32 64, %s186
          %s188 = smul.u32 %s187, 4
          %s190 = ssub.s32 512, %s188
          %191 = vsyncadd %s178, %s190
          %p192 = scmp.ne.s32.totalorder 0, %s188
          %s193 = smul.addr %s182, 8
          %s194 = sadd.s32 %s183, %s193
          %s195 = smul.addr %s194, 64
          %s196 = scalar_lea.hbm %s0, %s195
          %s197 = smul.u32 16, %s186
          %s198 = sshll.u32 %s181, 4
          %s199 = int_to_ptr.vmem [resolvable:$true] %s198
          %s200 = sshll.u32 %s197, 4
          %204 = dma.hbm_to_vmem [thread:$0]  (%p192), %s196, %s200, %s199, %s178, 512, 256, 16
        $region24: #{tpu_custom_call.1} parent=19 // pred_fallthru
          _
        // Predicated region
        $region25: #{tpu_custom_call.1} parent=19 // pred_check
          %p205 = pneg %p87
        $region26: #{tpu_custom_call.1} parent=19 // pred_check_branch
          %207 = sbr.rel (%p205) target = $region28
        $region27: #{tpu_custom_call.1} parent=19 // pred_region
          %s208 = sand.u32 %s77, 1
          %s209 = scalar_lea.sflag [#allocation6], %s208
          %s210 = sand.u32 %s77, 1
          %s211 = smul.addr %s210, 512
          %s212 = scalar_lea.vmem [#allocation5], %s211
          %s213 = smul.u32 64, %s27
          %s214 = smul.u32 2, %s26
          %s216 = ssub.s32 8192, 8192
          %217 = vsyncadd %s209, %s216
          %s218 = smul.addr %s213, 2
          %s219 = sadd.s32 %s214, %s218
          %s220 = smul.addr %s219, 64
          %s221 = scalar_lea.hbm %s1, %s220
          %s222 = sshll.u32 %s212, 4
          %s223 = int_to_ptr.vmem [resolvable:$true] %s222
          %228 = dma.hbm_to_vmem [thread:$0]  %s221, 8192, %s223, %s209, 128, 128, 8
        $region28: #{tpu_custom_call.1} parent=19 // pred_fallthru
          _
      $region20: #{tpu_custom_call.1} parent=5 // pred_fallthru
        _
      %p229 = scmp.le.s32.totalorder 1, %s18
      %p230 = scmp.lt.s32.totalorder %s18, 5
      %p231 = pnand %p229, %p230
      %p232 = pneg %p231
      // Predicated region
      $region29: #{tpu_custom_call.1} parent=5 // pred_check
        _
      $region30: #{tpu_custom_call.1} parent=5 // pred_check_branch
        %234 = sbr.rel (%p231) target = $region32
      $region31: #{tpu_custom_call.1} parent=5 // pred_region
        %s235 = ssub.s32 %s18, 1
        %s236 = sand.u32 %s52, 1
        %s237 = scalar_lea.sflag [#allocation3], %s236
        %s238 = sand.u32 %s52, 1
        %s239 = smul.addr %s238, 32
        %s240 = scalar_lea.vmem [#allocation2], %s239
        // Predicated region
        $region33: #{tpu_custom_call.1} parent=31 // pred_check
          %p241 = pneg %p65
        $region34: #{tpu_custom_call.1} parent=31 // pred_check_branch
          %243 = sbr.rel (%p241) target = $region36
        $region35: #{tpu_custom_call.1} parent=31 // pred_region
          %244 = dma.done %s237, 512
        $region36: #{tpu_custom_call.1} parent=31 // pred_fallthru
          _
        %s245 = sand.u32 %s80, 1
        %s246 = scalar_lea.sflag [#allocation6], %s245
        %s247 = sand.u32 %s80, 1
        %s248 = smul.addr %s247, 512
        %s249 = scalar_lea.vmem [#allocation5], %s248
        // Predicated region
        $region37: #{tpu_custom_call.1} parent=31 // pred_check
          %p250 = pneg %p93
        $region38: #{tpu_custom_call.1} parent=31 // pred_check_branch
          %252 = sbr.rel (%p250) target = $region40
        $region39: #{tpu_custom_call.1} parent=31 // pred_region
          %253 = dma.done %s246, 8192
        $region40: #{tpu_custom_call.1} parent=31 // pred_fallthru
          _
        %s254 = sand.u32 %s52, 1
        %s255 = scalar_lea.sflag [#allocation3], %s254
        %s256 = sand.u32 %s52, 1
        %s257 = smul.addr %s256, 32
        %s258 = scalar_lea.vmem [#allocation2], %s257
        %p259 = pneg %p65
        %p260 = pneg %p62
        %s261 = sand.u32 %s80, 1
        %s262 = scalar_lea.sflag [#allocation6], %s261
        %s263 = sand.u32 %s80, 1
        %s264 = smul.addr %s263, 512
        %s265 = scalar_lea.vmem [#allocation5], %s264
        %p266 = pneg %p93
        %p267 = pneg %p90
        %s268 = smul.u32 2, %s29
        %p269 = scmp.lt.s32.totalorder %s268, 1
        %s270 = scalar_select %p269, %s268, 1
        %s271 = scalar_lea.vmem %s2, %s270
        %p272 = pneg %p119
        %p273 = pneg %p116
        %p274 = pneg %p147
        %p275 = pneg %p144
        %s276 = sand.u32 %s134, 1
        %s277 = scalar_lea.sflag [#allocation4], %s276
        %s278 = sand.u32 %s134, 1
        %s279 = smul.addr %s278, 32
        %s280 = scalar_lea.vmem [#allocation7], %s279
        %s281 = smul.u32 2, %s28
        %s282 = smul.u32 4, %s30
        %s283 = ssub.s32 3, %s281
        %p284 = scmp.lt.s32.totalorder %s283, 2
        %s285 = scalar_select %p284, %s283, 2
        %s286 = smul.u32 64, %s285
        %s287 = smul.u32 %s286, 4
        %s288 = smul.u32 64, %s30
        %s289 = smul.u32 2, %s29
        %s290 = smul.u32 2, %s29
        %p291 = scmp.lt.s32.totalorder %s290, 1
        %s292 = scalar_select %p291, %s290, 1
        %s293 = scalar_lea.vmem %s2, %s292
        %s294 = smul.u32 2, %s29
        %s295 = smul.u32 2, %s28
        %s296 = smul.u32 2, %s29
        %s297 = ssub.s32 3, %s295
        %p298 = scmp.lt.s32.totalorder %s297, 2
        %s299 = scalar_select %p298, %s297, 2
        %s300 = smul.u32 128, %s299
        %s301 = smul.u32 %s300, 2
        %p302 = scmp.eq.s32.totalorder %s30, 0
        // Predicated region
        $region41: #{tpu_custom_call.1} parent=31 // pred_check
          %p303 = pneg %p302
        $region42: #{tpu_custom_call.1} parent=31 // pred_check_branch
          %305 = sbr.rel (%p303) target = $region44
        $region43: #{tpu_custom_call.1} parent=31 // pred_region
          %306 = vst [vmem:[%s280] sm:$0xff] 0.0
          %307 = vst [vmem:[%s280 + $0x8] sm:$0xff] 0.0
          %308 = vst [vmem:[%s280 + $0x10] sm:$0xff] 0.0
          %309 = vst [vmem:[%s280 + $0x18] sm:$0xff] 0.0
        $region44: #{tpu_custom_call.1} parent=31 // pred_fallthru
          _
        %v310 = vld [vmem:[%s280] sm:$0xff]
        %v311 = vld [vmem:[%s280 + $0x8] sm:$0xff]
        %v312 = vld [vmem:[%s280 + $0x10] sm:$0xff]
        %v313 = vld [vmem:[%s280 + $0x18] sm:$0xff]
        %v314 = vld [vmem:[%s240] sm:$0xff]
        %v315 = vld [vmem:[%s240 + $0x8] sm:$0xff]
        %v316 = vld [vmem:[%s240 + $0x10] sm:$0xff]
        %v317 = vld [vmem:[%s240 + $0x18] sm:$0xff]
        %v318 = vld [vmem:[%s249] sm:$0xff]
        %v319 = vld [vmem:[%s249 + $0x8] sm:$0xff]
        %v320 = vld [vmem:[%s249 + $0x10] sm:$0xff]
        %v321 = vld [vmem:[%s249 + $0x18] sm:$0xff]
        %v322 = vld [vmem:[%s249 + $0x20] sm:$0xff]
        %v323 = vld [vmem:[%s249 + $0x28] sm:$0xff]
        %v324 = vld [vmem:[%s249 + $0x30] sm:$0xff]
        %v325 = vld [vmem:[%s249 + $0x38] sm:$0xff]
        %v326 = vld [vmem:[%s249 + $0x40] sm:$0xff]
        %v327 = vld [vmem:[%s249 + $0x48] sm:$0xff]
        %v328 = vld [vmem:[%s249 + $0x50] sm:$0xff]
        %v329 = vld [vmem:[%s249 + $0x58] sm:$0xff]
        %v330 = vld [vmem:[%s249 + $0x60] sm:$0xff]
        %v331 = vld [vmem:[%s249 + $0x68] sm:$0xff]
        %v332 = vld [vmem:[%s249 + $0x70] sm:$0xff]
        %v333 = vld [vmem:[%s249 + $0x78] sm:$0xff]
        %v334 = vld [vmem:[%s249 + $0x80] sm:$0xff]
        %v335 = vld [vmem:[%s249 + $0x88] sm:$0xff]
        %v336 = vld [vmem:[%s249 + $0x90] sm:$0xff]
        %v337 = vld [vmem:[%s249 + $0x98] sm:$0xff]
        %v338 = vld [vmem:[%s249 + $0xa0] sm:$0xff]
        %v339 = vld [vmem:[%s249 + $0xa8] sm:$0xff]
        %v340 = vld [vmem:[%s249 + $0xb0] sm:$0xff]
        %v341 = vld [vmem:[%s249 + $0xb8] sm:$0xff]
        %v342 = vld [vmem:[%s249 + $0xc0] sm:$0xff]
        %v343 = vld [vmem:[%s249 + $0xc8] sm:$0xff]
        %v344 = vld [vmem:[%s249 + $0xd0] sm:$0xff]
        %v345 = vld [vmem:[%s249 + $0xd8] sm:$0xff]
        %v346 = vld [vmem:[%s249 + $0xe0] sm:$0xff]
        %v347 = vld [vmem:[%s249 + $0xe8] sm:$0xff]
        %v348 = vld [vmem:[%s249 + $0xf0] sm:$0xff]
        %v349 = vld [vmem:[%s249 + $0xf8] sm:$0xff]
        %v350 = vld [vmem:[%s249 + $0x100] sm:$0xff]
        %v351 = vld [vmem:[%s249 + $0x108] sm:$0xff]
        %v352 = vld [vmem:[%s249 + $0x110] sm:$0xff]
        %v353 = vld [vmem:[%s249 + $0x118] sm:$0xff]
        %v354 = vld [vmem:[%s249 + $0x120] sm:$0xff]
        %v355 = vld [vmem:[%s249 + $0x128] sm:$0xff]
        %v356 = vld [vmem:[%s249 + $0x130] sm:$0xff]
        %v357 = vld [vmem:[%s249 + $0x138] sm:$0xff]
        %v358 = vld [vmem:[%s249 + $0x140] sm:$0xff]
        %v359 = vld [vmem:[%s249 + $0x148] sm:$0xff]
        %v360 = vld [vmem:[%s249 + $0x150] sm:$0xff]
        %v361 = vld [vmem:[%s249 + $0x158] sm:$0xff]
        %v362 = vld [vmem:[%s249 + $0x160] sm:$0xff]
        %v363 = vld [vmem:[%s249 + $0x168] sm:$0xff]
        %v364 = vld [vmem:[%s249 + $0x170] sm:$0xff]
        %v365 = vld [vmem:[%s249 + $0x178] sm:$0xff]
        %v366 = vld [vmem:[%s249 + $0x180] sm:$0xff]
        %v367 = vld [vmem:[%s249 + $0x188] sm:$0xff]
        %v368 = vld [vmem:[%s249 + $0x190] sm:$0xff]
        %v369 = vld [vmem:[%s249 + $0x198] sm:$0xff]
        %v370 = vld [vmem:[%s249 + $0x1a0] sm:$0xff]
        %v371 = vld [vmem:[%s249 + $0x1a8] sm:$0xff]
        %v372 = vld [vmem:[%s249 + $0x1b0] sm:$0xff]
        %v373 = vld [vmem:[%s249 + $0x1b8] sm:$0xff]
        %v374 = vld [vmem:[%s249 + $0x1c0] sm:$0xff]
        %v375 = vld [vmem:[%s249 + $0x1c8] sm:$0xff]
        %v376 = vld [vmem:[%s249 + $0x1d0] sm:$0xff]
        %v377 = vld [vmem:[%s249 + $0x1d8] sm:$0xff]
        %v378 = vld [vmem:[%s249 + $0x1e0] sm:$0xff]
        %v379 = vld [vmem:[%s249 + $0x1e8] sm:$0xff]
        %v380 = vld [vmem:[%s249 + $0x1f0] sm:$0xff]
        %v381 = vld [vmem:[%s249 + $0x1f8] sm:$0xff]
        %v386 = vunpack.c.l.b16 %v314
        %v387 = vunpack.c.h.b16 %v314
        %v388 = vunpack.c.l.b16 %v315
        %v389 = vunpack.c.h.b16 %v315
        %v390 = vunpack.c.l.b16 %v316
        %v391 = vunpack.c.h.b16 %v316
        %v392 = vunpack.c.l.b16 %v317
        %v393 = vunpack.c.h.b16 %v317
        %v394 = vpack.c.b16 %v390, %v386
        %v395 = vpack.c.b16 %v391, %v387
        %v396 = vpack.c.b16 %v392, %v388
        %v397 = vpack.c.b16 %v393, %v389
        %v466 = vunpack.c.l.b16 %v318
        %v467 = vunpack.c.h.b16 %v318
        %v468 = vunpack.c.l.b16 %v319
        %v469 = vunpack.c.h.b16 %v319
        %v470 = vunpack.c.l.b16 %v320
        %v471 = vunpack.c.h.b16 %v320
        %v472 = vunpack.c.l.b16 %v321
        %v473 = vunpack.c.h.b16 %v321
        %v474 = vunpack.c.l.b16 %v322
        %v475 = vunpack.c.h.b16 %v322
        %v476 = vunpack.c.l.b16 %v323
        %v477 = vunpack.c.h.b16 %v323
        %v478 = vunpack.c.l.b16 %v324
        %v479 = vunpack.c.h.b16 %v324
        %v480 = vunpack.c.l.b16 %v325
        %v481 = vunpack.c.h.b16 %v325
        %v482 = vunpack.c.l.b16 %v326
        %v483 = vunpack.c.h.b16 %v326
        %v484 = vunpack.c.l.b16 %v327
        %v485 = vunpack.c.h.b16 %v327
        %v486 = vunpack.c.l.b16 %v328
        %v487 = vunpack.c.h.b16 %v328
        %v488 = vunpack.c.l.b16 %v329
        %v489 = vunpack.c.h.b16 %v329
        %v490 = vunpack.c.l.b16 %v330
        %v491 = vunpack.c.h.b16 %v330
        %v492 = vunpack.c.l.b16 %v331
        %v493 = vunpack.c.h.b16 %v331
        %v494 = vunpack.c.l.b16 %v332
        %v495 = vunpack.c.h.b16 %v332
        %v496 = vunpack.c.l.b16 %v333
        %v497 = vunpack.c.h.b16 %v333
        %v498 = vunpack.c.l.b16 %v334
        %v499 = vunpack.c.h.b16 %v334
        %v500 = vunpack.c.l.b16 %v335
        %v501 = vunpack.c.h.b16 %v335
        %v502 = vunpack.c.l.b16 %v336
        %v503 = vunpack.c.h.b16 %v336
        %v504 = vunpack.c.l.b16 %v337
        %v505 = vunpack.c.h.b16 %v337
        %v506 = vunpack.c.l.b16 %v338
        %v507 = vunpack.c.h.b16 %v338
        %v508 = vunpack.c.l.b16 %v339
        %v509 = vunpack.c.h.b16 %v339
        %v510 = vunpack.c.l.b16 %v340
        %v511 = vunpack.c.h.b16 %v340
        %v512 = vunpack.c.l.b16 %v341
        %v513 = vunpack.c.h.b16 %v341
        %v514 = vunpack.c.l.b16 %v342
        %v515 = vunpack.c.h.b16 %v342
        %v516 = vunpack.c.l.b16 %v343
        %v517 = vunpack.c.h.b16 %v343
        %v518 = vunpack.c.l.b16 %v344
        %v519 = vunpack.c.h.b16 %v344
        %v520 = vunpack.c.l.b16 %v345
        %v521 = vunpack.c.h.b16 %v345
        %v522 = vunpack.c.l.b16 %v346
        %v523 = vunpack.c.h.b16 %v346
        %v524 = vunpack.c.l.b16 %v347
        %v525 = vunpack.c.h.b16 %v347
        %v526 = vunpack.c.l.b16 %v348
        %v527 = vunpack.c.h.b16 %v348
        %v528 = vunpack.c.l.b16 %v349
        %v529 = vunpack.c.h.b16 %v349
        %v530 = vunpack.c.l.b16 %v350
        %v531 = vunpack.c.h.b16 %v350
        %v532 = vunpack.c.l.b16 %v351
        %v533 = vunpack.c.h.b16 %v351
        %v534 = vunpack.c.l.b16 %v352
        %v535 = vunpack.c.h.b16 %v352
        %v536 = vunpack.c.l.b16 %v353
        %v537 = vunpack.c.h.b16 %v353
        %v538 = vunpack.c.l.b16 %v354
        %v539 = vunpack.c.h.b16 %v354
        %v540 = vunpack.c.l.b16 %v355
        %v541 = vunpack.c.h.b16 %v355
        %v542 = vunpack.c.l.b16 %v356
        %v543 = vunpack.c.h.b16 %v356
        %v544 = vunpack.c.l.b16 %v357
        %v545 = vunpack.c.h.b16 %v357
        %v546 = vunpack.c.l.b16 %v358
        %v547 = vunpack.c.h.b16 %v358
        %v548 = vunpack.c.l.b16 %v359
        %v549 = vunpack.c.h.b16 %v359
        %v550 = vunpack.c.l.b16 %v360
        %v551 = vunpack.c.h.b16 %v360
        %v552 = vunpack.c.l.b16 %v361
        %v553 = vunpack.c.h.b16 %v361
        %v554 = vunpack.c.l.b16 %v362
        %v555 = vunpack.c.h.b16 %v362
        %v556 = vunpack.c.l.b16 %v363
        %v557 = vunpack.c.h.b16 %v363
        %v558 = vunpack.c.l.b16 %v364
        %v559 = vunpack.c.h.b16 %v364
        %v560 = vunpack.c.l.b16 %v365
        %v561 = vunpack.c.h.b16 %v365
        %v562 = vunpack.c.l.b16 %v366
        %v563 = vunpack.c.h.b16 %v366
        %v564 = vunpack.c.l.b16 %v367
        %v565 = vunpack.c.h.b16 %v367
        %v566 = vunpack.c.l.b16 %v368
        %v567 = vunpack.c.h.b16 %v368
        %v568 = vunpack.c.l.b16 %v369
        %v569 = vunpack.c.h.b16 %v369
        %v570 = vunpack.c.l.b16 %v370
        %v571 = vunpack.c.h.b16 %v370
        %v572 = vunpack.c.l.b16 %v371
        %v573 = vunpack.c.h.b16 %v371
        %v574 = vunpack.c.l.b16 %v372
        %v575 = vunpack.c.h.b16 %v372
        %v576 = vunpack.c.l.b16 %v373
        %v577 = vunpack.c.h.b16 %v373
        %v578 = vunpack.c.l.b16 %v374
        %v579 = vunpack.c.h.b16 %v374
        %v580 = vunpack.c.l.b16 %v375
        %v581 = vunpack.c.h.b16 %v375
        %v582 = vunpack.c.l.b16 %v376
        %v583 = vunpack.c.h.b16 %v376
        %v584 = vunpack.c.l.b16 %v377
        %v585 = vunpack.c.h.b16 %v377
        %v586 = vunpack.c.l.b16 %v378
        %v587 = vunpack.c.h.b16 %v378
        %v588 = vunpack.c.l.b16 %v379
        %v589 = vunpack.c.h.b16 %v379
        %v590 = vunpack.c.l.b16 %v380
        %v591 = vunpack.c.h.b16 %v380
        %v592 = vunpack.c.l.b16 %v381
        %v593 = vunpack.c.h.b16 %v381
        %v594 = vpack.c.b16 %v468, %v466
        %v595 = vpack.c.b16 %v469, %v467
        %v596 = vpack.c.b16 %v472, %v470
        %v597 = vpack.c.b16 %v473, %v471
        %v598 = vpack.c.b16 %v476, %v474
        %v599 = vpack.c.b16 %v477, %v475
        %v600 = vpack.c.b16 %v480, %v478
        %v601 = vpack.c.b16 %v481, %v479
        %v602 = vpack.c.b16 %v484, %v482
        %v603 = vpack.c.b16 %v485, %v483
        %v604 = vpack.c.b16 %v488, %v486
        %v605 = vpack.c.b16 %v489, %v487
        %v606 = vpack.c.b16 %v492, %v490
        %v607 = vpack.c.b16 %v493, %v491
        %v608 = vpack.c.b16 %v496, %v494
        %v609 = vpack.c.b16 %v497, %v495
        %v610 = vpack.c.b16 %v500, %v498
        %v611 = vpack.c.b16 %v501, %v499
        %v612 = vpack.c.b16 %v504, %v502
        %v613 = vpack.c.b16 %v505, %v503
        %v614 = vpack.c.b16 %v508, %v506
        %v615 = vpack.c.b16 %v509, %v507
        %v616 = vpack.c.b16 %v512, %v510
        %v617 = vpack.c.b16 %v513, %v511
        %v618 = vpack.c.b16 %v516, %v514
        %v619 = vpack.c.b16 %v517, %v515
        %v620 = vpack.c.b16 %v520, %v518
        %v621 = vpack.c.b16 %v521, %v519
        %v622 = vpack.c.b16 %v524, %v522
        %v623 = vpack.c.b16 %v525, %v523
        %v624 = vpack.c.b16 %v528, %v526
        %v625 = vpack.c.b16 %v529, %v527
        %v626 = vpack.c.b16 %v532, %v530
        %v627 = vpack.c.b16 %v533, %v531
        %v628 = vpack.c.b16 %v536, %v534
        %v629 = vpack.c.b16 %v537, %v535
        %v630 = vpack.c.b16 %v540, %v538
        %v631 = vpack.c.b16 %v541, %v539
        %v632 = vpack.c.b16 %v544, %v542
        %v633 = vpack.c.b16 %v545, %v543
        %v634 = vpack.c.b16 %v548, %v546
        %v635 = vpack.c.b16 %v549, %v547
        %v636 = vpack.c.b16 %v552, %v550
        %v637 = vpack.c.b16 %v553, %v551
        %v638 = vpack.c.b16 %v556, %v554
        %v639 = vpack.c.b16 %v557, %v555
        %v640 = vpack.c.b16 %v560, %v558
        %v641 = vpack.c.b16 %v561, %v559
        %v642 = vpack.c.b16 %v564, %v562
        %v643 = vpack.c.b16 %v565, %v563
        %v644 = vpack.c.b16 %v568, %v566
        %v645 = vpack.c.b16 %v569, %v567
        %v646 = vpack.c.b16 %v572, %v570
        %v647 = vpack.c.b16 %v573, %v571
        %v648 = vpack.c.b16 %v576, %v574
        %v649 = vpack.c.b16 %v577, %v575
        %v650 = vpack.c.b16 %v580, %v578
        %v651 = vpack.c.b16 %v581, %v579
        %v652 = vpack.c.b16 %v584, %v582
        %v653 = vpack.c.b16 %v585, %v583
        %v654 = vpack.c.b16 %v588, %v586
        %v655 = vpack.c.b16 %v589, %v587
        %v656 = vpack.c.b16 %v592, %v590
        %v657 = vpack.c.b16 %v593, %v591
        %722 = vmatprep.subr.bf16.mxu0 %v609
        %723 = vmatpush1.bf16.msra.mxu0 %v608
        %724 = vmatprep.subr.bf16.mxu0 %v607
        %725 = vmatpush1.bf16.msra.mxu0 %v606
        %726 = vmatprep.subr.bf16.mxu0 %v605
        %727 = vmatpush1.bf16.msra.mxu0 %v604
        %728 = vmatprep.subr.bf16.mxu0 %v603
        %729 = vmatpush1.bf16.msra.mxu0 %v602
        %730 = vmatprep.subr.bf16.mxu0 %v601
        %731 = vmatpush1.bf16.msra.mxu0 %v600
        %732 = vmatprep.subr.bf16.mxu0 %v599
        %733 = vmatpush1.bf16.msra.mxu0 %v598
        %734 = vmatprep.subr.bf16.mxu0 %v597
        %735 = vmatpush1.bf16.msra.mxu0 %v596
        %736 = vmatprep.subr.bf16.mxu0 %v595
        %737 = vmatpush1.bf16.msra.mxu0 %v594
        %738 = vmatprep.subr.bf16.mxu0 %v625
        %739 = vmatpush2.bf16.msra.mxu0 %v624
        %740 = vmatprep.subr.bf16.mxu0 %v623
        %741 = vmatpush2.bf16.msra.mxu0 %v622
        %742 = vmatprep.subr.bf16.mxu0 %v621
        %743 = vmatpush2.bf16.msra.mxu0 %v620
        %744 = vmatprep.subr.bf16.mxu0 %v619
        %745 = vmatpush2.bf16.msra.mxu0 %v618
        %746 = vmatprep.subr.bf16.mxu0 %v617
        %747 = vmatpush2.bf16.msra.mxu0 %v616
        %748 = vmatprep.subr.bf16.mxu0 %v615
        %749 = vmatpush2.bf16.msra.mxu0 %v614
        %750 = vmatprep.subr.bf16.mxu0 %v613
        %751 = vmatpush2.bf16.msra.mxu0 %v612
        %752 = vmatprep.subr.bf16.mxu0 %v611
        %753 = vmatpush2.bf16.msra.mxu0 %v610
        %754 = vmatprep.mubr.bf16.mxu0 %v395
        %755 = vmatmul.mubr.bf16.gmra.mxu0 %v394
        %v756 = vpop.f32.mrf.mxu0
        %v757 = vadd.f32 0.0, %v756
        %v758 = vpop.f32.mrf.mxu0
        %v759 = vadd.f32 0.0, %v758
        %v760 = vpop.f32.mrf.mxu0
        %v761 = vadd.f32 0.0, %v760
        %v762 = vpop.f32.mrf.mxu0
        %v763 = vadd.f32 0.0, %v762
        %764 = vdwg.mxu0
        %765 = vmatprep.subr.bf16.mxu0 %v641
        %766 = vmatpush1.bf16.msra.mxu0 %v640
        %767 = vmatprep.subr.bf16.mxu0 %v639
        %768 = vmatpush1.bf16.msra.mxu0 %v638
        %769 = vmatprep.subr.bf16.mxu0 %v637
        %770 = vmatpush1.bf16.msra.mxu0 %v636
        %771 = vmatprep.subr.bf16.mxu0 %v635
        %772 = vmatpush1.bf16.msra.mxu0 %v634
        %773 = vmatprep.subr.bf16.mxu0 %v633
        %774 = vmatpush1.bf16.msra.mxu0 %v632
        %775 = vmatprep.subr.bf16.mxu0 %v631
        %776 = vmatpush1.bf16.msra.mxu0 %v630
        %777 = vmatprep.subr.bf16.mxu0 %v629
        %778 = vmatpush1.bf16.msra.mxu0 %v628
        %779 = vmatprep.subr.bf16.mxu0 %v627
        %780 = vmatpush1.bf16.msra.mxu0 %v626
        %781 = vmatprep.subr.bf16.mxu0 %v657
        %782 = vmatpush2.bf16.msra.mxu0 %v656
        %783 = vmatprep.subr.bf16.mxu0 %v655
        %784 = vmatpush2.bf16.msra.mxu0 %v654
        %785 = vmatprep.subr.bf16.mxu0 %v653
        %786 = vmatpush2.bf16.msra.mxu0 %v652
        %787 = vmatprep.subr.bf16.mxu0 %v651
        %788 = vmatpush2.bf16.msra.mxu0 %v650
        %789 = vmatprep.subr.bf16.mxu0 %v649
        %790 = vmatpush2.bf16.msra.mxu0 %v648
        %791 = vmatprep.subr.bf16.mxu0 %v647
        %792 = vmatpush2.bf16.msra.mxu0 %v646
        %793 = vmatprep.subr.bf16.mxu0 %v645
        %794 = vmatpush2.bf16.msra.mxu0 %v644
        %795 = vmatprep.subr.bf16.mxu0 %v643
        %796 = vmatpush2.bf16.msra.mxu0 %v642
        %797 = vmatprep.mubr.bf16.mxu0 %v397
        %798 = vmatmul.mubr.bf16.gmra.mxu0 %v396
        %v799 = vpop.f32.mrf.mxu0
        %v800 = vadd.f32 %v757, %v799
        %v801 = vpop.f32.mrf.mxu0
        %v802 = vadd.f32 %v759, %v801
        %v803 = vpop.f32.mrf.mxu0
        %v804 = vadd.f32 %v761, %v803
        %v805 = vpop.f32.mrf.mxu0
        %v806 = vadd.f32 %v763, %v805
        %807 = vdwg.mxu0
        %v808 = vadd.f32 %v310, %v800
        %v809 = vadd.f32 %v311, %v802
        %v810 = vadd.f32 %v312, %v804
        %v811 = vadd.f32 %v313, %v806
        %812 = vst [vmem:[%s280] sm:$0xff] %v808
        %813 = vst [vmem:[%s280 + $0x8] sm:$0xff] %v809
        %814 = vst [vmem:[%s280 + $0x10] sm:$0xff] %v810
        %815 = vst [vmem:[%s280 + $0x18] sm:$0xff] %v811
        %p816 = scmp.eq.s32.totalorder %s30, 1
        // Predicated region
        $region45: #{tpu_custom_call.1} parent=31 // pred_check
          %p817 = pneg %p816
        $region46: #{tpu_custom_call.1} parent=31 // pred_check_branch
          %819 = sbr.rel (%p817) target = $region48
        $region47: #{tpu_custom_call.1} parent=31 // pred_region
          %v820 = vld [vmem:[%s280] sm:$0xff]
          %v821 = vld [vmem:[%s280 + $0x8] sm:$0xff]
          %v822 = vld [vmem:[%s280 + $0x10] sm:$0xff]
          %v823 = vld [vmem:[%s280 + $0x18] sm:$0xff]
          %v824 = vld [vmem:[%s293] sm:$0x3]
          %v826 = vlaneseq
          %v827 = vshrl.u32 %v826, 7
          %v828 = vsub.s32 0, %v827
          %v829 = vrot.slane %v824, %v828
          %v830 = vlaneseq
          %v831 = vshrl.u32 %v830, 7
          %v832 = vsub.s32 1, %v831
          %v833 = vrot.slane %v824, %v832
          %v836 = vadd.f32 %v820, %v829
          %v837 = vadd.f32 %v821, %v833
          %v838 = vadd.f32 %v822, %v829
          %v839 = vadd.f32 %v823, %v833
          %840 = vst [vmem:[%s280] sm:$0xff] %v836
          %841 = vst [vmem:[%s280 + $0x8] sm:$0xff] %v837
          %842 = vst [vmem:[%s280 + $0x10] sm:$0xff] %v838
          %843 = vst [vmem:[%s280 + $0x18] sm:$0xff] %v839
        $region48: #{tpu_custom_call.1} parent=31 // pred_fallthru
          _
        %s844 = sand.u32 %s134, 1
        %s845 = scalar_lea.sflag [#allocation4], %s844
        %s846 = sand.u32 %s134, 1
        %s847 = smul.addr %s846, 32
        %s848 = scalar_lea.vmem [#allocation7], %s847
        // Predicated region
        $region49: #{tpu_custom_call.1} parent=31 // pred_check
          %p849 = pneg %p144
        $region50: #{tpu_custom_call.1} parent=31 // pred_check_branch
          %851 = sbr.rel (%p849) target = $region52
        $region51: #{tpu_custom_call.1} parent=31 // pred_region
          %s852 = smul.u32 2, %s28
          %s853 = smul.u32 2, %s29
          %s854 = ssub.s32 3, %s852
          %p855 = scmp.lt.s32.totalorder %s854, 2
          %s856 = scalar_select %p855, %s854, 2
          %s857 = smul.u32 128, %s856
          %s858 = smul.u32 %s857, 2
          %s860 = ssub.s32 512, %s858
          %861 = vsyncadd %s845, %s860
          %p862 = scmp.ne.s32.totalorder 0, %s858
          %s863 = smul.addr %s852, 2
          %s864 = sadd.s32 %s853, %s863
          %s865 = smul.addr %s864, 128
          %s866 = scalar_lea.hbm %s3, %s865
          %s867 = smul.u32 16, %s856
          %s868 = sshll.u32 %s848, 4
          %s869 = int_to_ptr.vmem [resolvable:$true] %s868
          %s870 = sshll.u32 %s867, 4
          %874 = dma.vmem_to_hbm [thread:$0]  (%p862), %s869, %s870, %s866, %s845, 256, 256, 16
        $region52: #{tpu_custom_call.1} parent=31 // pred_fallthru
          _
      $region32: #{tpu_custom_call.1} parent=5 // pred_fallthru
        _
      %p875 = scmp.le.s32.totalorder 2, %s18
      // Predicated region
      $region53: #{tpu_custom_call.1} parent=5 // pred_check
        %p876 = pneg %p875
      $region54: #{tpu_custom_call.1} parent=5 // pred_check_branch
        %878 = sbr.rel (%p876) target = $region56
      $region55: #{tpu_custom_call.1} parent=5 // pred_region
        %s879 = ssub.s32 %s18, 2
        // Predicated region
        $region57: #{tpu_custom_call.1} parent=55 // pred_check
          %p880 = pneg %p150
        $region58: #{tpu_custom_call.1} parent=55 // pred_check_branch
          %882 = sbr.rel (%p880) target = $region60
        $region59: #{tpu_custom_call.1} parent=55 // pred_region
          %s883 = sand.u32 %s135, 1
          %s884 = scalar_lea.sflag [#allocation4], %s883
          %s885 = sand.u32 %s135, 1
          %s886 = smul.addr %s885, 32
          %s887 = scalar_lea.vmem [#allocation7], %s886
          %888 = dma.done %s884, 512
        $region60: #{tpu_custom_call.1} parent=55 // pred_fallthru
          _
      $region56: #{tpu_custom_call.1} parent=5 // pred_fallthru
        _
    $region6: #{tpu_custom_call.1} parent=1 // loop_footer
      %s22 = sadd.s32 1, %s18
    $region7: #{tpu_custom_call.1} parent=1 // loop_footer_branch
      %17 = sbr.rel target = $region3
    $region8: #{tpu_custom_call.1} parent=1 // loop_exit
      _
    %889 = vsyncpa [#allocation3], 1
    %s890 = scalar_lea.sflag [#allocation3], 1
    %891 = vsyncpa %s890, 1
    %892 = vsyncpa [#allocation6], 1
    %s893 = scalar_lea.sflag [#allocation6], 1
    %894 = vsyncpa %s893, 1
    %895 = vsyncpa [#allocation4], 1
    %s896 = scalar_lea.sflag [#allocation4], 1
    %897 = vsyncpa %s896, 1

</llo_original>
